<compile_context>
chip_gen: v7x
topology: tpu7x:2x2x1
jax: 0.10.0
libtpu: 0.0.40
codegen_flags: <defaults>
</compile_context>

<pallas_src>
import functools

import jax
import jax.numpy as jnp
from jax import lax
from jax.experimental import pallas as pl
from jax.experimental.pallas import tpu as pltpu

BN_EPS = 1e-5
VMEM_LIMIT = 32 * 1024 * 1024  # above v5e's 16 MiB default, safe on v6e/v7x


def _round_up(x, m):
    return ((x + m - 1) // m) * m


# ---------- pass 1: tiled MXU matmul + per-channel sum / sum-of-squares ----------
def _matmul_stats_kernel(x_ref, w_ref, y_ref, sum_ref, sq_ref):
    # x_ref: (TILE_M, K_pad) bf16   w_ref: (K_pad, C_pad) bf16 (VMEM-resident)
    # y_ref: (TILE_M, C_pad) f32    sum_ref/sq_ref: (1, C_pad) f32 accumulators
    @pl.when(pl.program_id(0) == 0)
    def _():
        sum_ref[...] = jnp.zeros_like(sum_ref)
        sq_ref[...] = jnp.zeros_like(sq_ref)

    y = jnp.dot(x_ref[...], w_ref[...], preferred_element_type=jnp.float32)
    y_ref[...] = y
    # One-pass stats. Padded rows/channels are exactly zero so they contribute
    # nothing; pass 2 divides by the *real* row count.
    sum_ref[...] += jnp.sum(y, axis=0, keepdims=True)
    sq_ref[...] += jnp.sum(y * y, axis=0, keepdims=True)


# ---------- pass 2: normalize + affine + ReLU ------------------------------------
def _bn_relu_kernel(y_ref, sum_ref, sq_ref, gamma_ref, beta_ref, o_ref, *,
                    n_rows, is_relu):
    inv_m = 1.0 / float(n_rows)
    mean = sum_ref[...] * inv_m                                   # (1, C_pad)
    var = jnp.maximum(sq_ref[...] * inv_m - mean * mean, 0.0)     # biased var
    inv_std = lax.rsqrt(var + BN_EPS)
    scale = gamma_ref[...] * inv_std                              # (1, C_pad)
    shift = beta_ref[...] - mean * scale                          # (1, C_pad)
    out = y_ref[...] * scale + shift
    if is_relu:
        out = jnp.maximum(out, 0.0)
    o_ref[...] = out.astype(o_ref.dtype)


def conv_bn_relu(x, weight, gamma, beta, *, stride=1, padding=1, is_relu=True,
                 tile_m=512):
    """x: (N, C_in, H, W) f32; weight: (C_out, C_in, ks, ks); gamma/beta: (C_out,)."""
    N, C_in, H, W = x.shape
    C_out, _, ks, _ = weight.shape
    H_out = (H + 2 * padding - ks) // stride + 1
    W_out = (W + 2 * padding - ks) // stride + 1

    # ---- glue: im2col patch extraction (layout plumbing, plain JAX) ----
    xp = jnp.pad(x, ((0, 0), (0, 0), (padding, padding), (padding, padding)))
    cols = []
    for kh in range(ks):
        for kw in range(ks):
            cols.append(
                xp[:, :, kh:kh + stride * H_out:stride, kw:kw + stride * W_out:stride]
            )  # (N, C_in, H_out, W_out)
    patches = jnp.stack(cols, axis=2)              # (N, C_in, ks*ks, H_out, W_out)
    patches = patches.transpose(0, 3, 4, 1, 2)     # (N, H_out, W_out, C_in, ks*ks)
    M = N * H_out * W_out
    K = C_in * ks * ks
    patches = patches.reshape(M, K)

    # ---- pad to MXU/lane-friendly shapes, cast matmul operands to bf16 ----
    tile_m = min(tile_m, _round_up(M, 8))
    M_pad = _round_up(M, tile_m)
    K_pad = _round_up(K, 128)
    C_pad = _round_up(C_out, 128)
    num_tiles = M_pad // tile_m

    patches_p = jnp.pad(patches, ((0, M_pad - M), (0, K_pad - K))).astype(jnp.bfloat16)
    w_mat = weight.reshape(C_out, K).T.astype(jnp.float32)          # (K, C_out)
    w_p = jnp.pad(w_mat, ((0, K_pad - K), (0, C_pad - C_out))).astype(jnp.bfloat16)
    gamma_p = jnp.pad(gamma.reshape(1, C_out).astype(jnp.float32),
                      ((0, 0), (0, C_pad - C_out)))
    beta_p = jnp.pad(beta.reshape(1, C_out).astype(jnp.float32),
                     ((0, 0), (0, C_pad - C_out)))

    # ---- pass 1: matmul + stats accumulation (reduction over M tiles) ----
    y_pad, ch_sum, ch_sq = pl.pallas_call(
        _matmul_stats_kernel,
        out_shape=(
            jax.ShapeDtypeStruct((M_pad, C_pad), jnp.float32),
            jax.ShapeDtypeStruct((1, C_pad), jnp.float32),
            jax.ShapeDtypeStruct((1, C_pad), jnp.float32),
        ),
        grid=(num_tiles,),
        in_specs=[
            pl.BlockSpec((tile_m, K_pad), lambda i: (i, 0)),
            pl.BlockSpec((K_pad, C_pad), lambda i: (0, 0)),   # resident weights
        ],
        out_specs=(
            pl.BlockSpec((tile_m, C_pad), lambda i: (i, 0)),
            pl.BlockSpec((1, C_pad), lambda i: (0, 0)),        # resident accumulator
            pl.BlockSpec((1, C_pad), lambda i: (0, 0)),        # resident accumulator
        ),
        compiler_params=pltpu.CompilerParams(
            dimension_semantics=("arbitrary",),
            vmem_limit_bytes=VMEM_LIMIT,
        ),
    )(patches_p, w_p)

    # ---- pass 2: normalize + affine + ReLU (independent across M tiles) ----
    kernel_b = functools.partial(_bn_relu_kernel, n_rows=M, is_relu=is_relu)
    out_2d = pl.pallas_call(
        kernel_b,
        out_shape=jax.ShapeDtypeStruct((M_pad, C_pad), jnp.float32),
        grid=(num_tiles,),
        in_specs=[
            pl.BlockSpec((tile_m, C_pad), lambda i: (i, 0)),
            pl.BlockSpec((1, C_pad), lambda i: (0, 0)),
            pl.BlockSpec((1, C_pad), lambda i: (0, 0)),
            pl.BlockSpec((1, C_pad), lambda i: (0, 0)),
            pl.BlockSpec((1, C_pad), lambda i: (0, 0)),
        ],
        out_specs=pl.BlockSpec((tile_m, C_pad), lambda i: (i, 0)),
        compiler_params=pltpu.CompilerParams(
            dimension_semantics=("parallel",),
            vmem_limit_bytes=VMEM_LIMIT,
        ),
    )(y_pad, ch_sum, ch_sq, gamma_p, beta_p)

    # strip padding, (M, C_out) -> (N, H_out, W_out, C_out) -> NCHW
    out = out_2d[:M, :C_out].reshape(N, H_out, W_out, C_out)
    return out.transpose(0, 3, 1, 2)


def _reference(x, weight, gamma, beta, *, stride=1, padding=1, is_relu=True):
    y = lax.conv_general_dilated(
        x, weight, window_strides=(stride, stride),
        padding=[(padding, padding), (padding, padding)],
        dimension_numbers=("NCHW", "OIHW", "NCHW"),
    )
    mean = jnp.mean(y, axis=(0, 2, 3), keepdims=True)
    var = jnp.mean((y - mean) ** 2, axis=(0, 2, 3), keepdims=True)
    out = (y - mean) * lax.rsqrt(var + BN_EPS)
    out = out * gamma.reshape(1, -1, 1, 1) + beta.reshape(1, -1, 1, 1)
    if is_relu:
        out = jnp.maximum(out, 0.0)
    return out


if __name__ == "__main__":
    # Small shapes consistent with ConvBNReLU defaults: ks=3, stride=1, pad=1
    N, C_in, H, W = 2, 4, 16, 16
    C_out, ks = 8, 3

    key = jax.random.PRNGKey(0)
    kx, kw = jax.random.split(key)

    x = jax.random.normal(kx, (N, C_in, H, W), dtype=jnp.float32)

    # kaiming_normal_(a=1): gain = sqrt(2/(1+a^2)) = 1, std = 1/sqrt(fan_in)
    fan_in = C_in * ks * ks
    weight = jax.random.normal(kw, (C_out, C_in, ks, ks), dtype=jnp.float32) / jnp.sqrt(
        jnp.float32(fan_in)
    )
    # BatchNorm2d default affine init
    gamma = jnp.ones((C_out,), dtype=jnp.float32)
    beta = jnp.zeros((C_out,), dtype=jnp.float32)

    # tile_m=128 so the small test exercises the multi-tile stats accumulation
    # (M = 2*16*16 = 512 -> 4 grid steps). Default tile_m=512 for real shapes.
    out = conv_bn_relu(x, weight, gamma, beta, stride=1, padding=1, is_relu=True,
                       tile_m=128)
    jax.block_until_ready(out)

    ref = _reference(x, weight, gamma, beta, stride=1, padding=1, is_relu=True)
    assert out.shape == (N, C_out, H, W)
    # bf16 matmul operands (f32 accumulation) -> bf16-level tolerance vs f32 reference
    assert jnp.allclose(out, ref, rtol=2e-2, atol=2e-2), float(jnp.max(jnp.abs(out - ref)))

    print("KERNEL_OK")
</pallas_src>

<mosaic_0001>
module attributes {stable_mosaic.version = 11 : i64} {
  func.func @_matmul_stats_kernel(%arg0: i32, %arg1: memref<128x128xbf16, #tpu.memory_space<vmem>>, %arg2: memref<128x128xbf16, #tpu.memory_space<vmem>>, %arg3: memref<128x128xf32, #tpu.memory_space<vmem>>, %arg4: memref<1x128xf32, #tpu.memory_space<vmem>>, %arg5: memref<1x128xf32, #tpu.memory_space<vmem>>) attributes {dimension_semantics = [#tpu.dimension_semantics<arbitrary>], iteration_bounds = array<i64: 4>, scalar_prefetch = 0 : i64, scratch_operands = 0 : i64, tpu.core_type = #tpu.core_type<tc>, window_params = [{transform_indices = @transform_0, window_bounds = array<i64: 128, 128>}, {pipeline_mode = #tpu.pipeline_mode<synchronous>, transform_indices = @transform_1, window_bounds = array<i64: 128, 128>}, {transform_indices = @transform_2, window_bounds = array<i64: 128, 128>}, {pipeline_mode = #tpu.pipeline_mode<synchronous>, transform_indices = @transform_3, window_bounds = array<i64: 1, 128>}, {pipeline_mode = #tpu.pipeline_mode<synchronous>, transform_indices = @transform_4, window_bounds = array<i64: 1, 128>}]} {
    %c0_i32 = arith.constant 0 : i32
    %0 = arith.cmpi eq, %arg0, %c0_i32 : i32
    %1 = arith.extui %0 : i1 to i32
    %c0_i32_0 = arith.constant 0 : i32
    %2 = arith.cmpi ne, %1, %c0_i32_0 : i32
    scf.if %2 {
      %cst_16 = arith.constant 0.000000e+00 : f32
      %18 = vector.broadcast %cst_16 : f32 to vector<1x128xf32>
      %c0_17 = arith.constant 0 : index
      %c0_18 = arith.constant 0 : index
      %19 = vector.load %arg4[%c0_17, %c0_18] : memref<1x128xf32, #tpu.memory_space<vmem>>, vector<1x128xf32>
      tpu.vector_store %arg4[%c0_17, %c0_18], %18 {strides = array<i32>} : memref<1x128xf32, #tpu.memory_space<vmem>>, vector<1x128xf32>,
      %cst_19 = arith.constant 0.000000e+00 : f32
      %20 = vector.broadcast %cst_19 : f32 to vector<1x128xf32>
      %c0_20 = arith.constant 0 : index
      %c0_21 = arith.constant 0 : index
      %21 = vector.load %arg5[%c0_20, %c0_21] : memref<1x128xf32, #tpu.memory_space<vmem>>, vector<1x128xf32>
      tpu.vector_store %arg5[%c0_20, %c0_21], %20 {strides = array<i32>} : memref<1x128xf32, #tpu.memory_space<vmem>>, vector<1x128xf32>,
    } else {
    }
    %c0 = arith.constant 0 : index
    %c0_1 = arith.constant 0 : index
    %3 = vector.load %arg1[%c0, %c0_1] : memref<128x128xbf16, #tpu.memory_space<vmem>>, vector<128x128xbf16>
    %c0_2 = arith.constant 0 : index
    %c0_3 = arith.constant 0 : index
    %4 = vector.load %arg2[%c0_2, %c0_3] : memref<128x128xbf16, #tpu.memory_space<vmem>>, vector<128x128xbf16>
    %cst = arith.constant dense<0.000000e+00> : vector<128x128xf32>
    %5 = tpu.matmul %3, %4, %cst {dimension_numbers = #tpu.dot_dimension_numbers<[1], [0], [0], [1], [0, 0, 1, 1], [], []>} : vector<128x128xbf16>, vector<128x128xbf16>, vector<128x128xf32> -> vector<128x128xf32>
    %c0_4 = arith.constant 0 : index
    %c0_5 = arith.constant 0 : index
    %6 = vector.load %arg3[%c0_4, %c0_5] : memref<128x128xf32, #tpu.memory_space<vmem>>, vector<128x128xf32>
    tpu.vector_store %arg3[%c0_4, %c0_5], %5 {strides = array<i32>} : memref<128x128xf32, #tpu.memory_space<vmem>>, vector<128x128xf32>,
    %c0_6 = arith.constant 0 : index
    %c0_7 = arith.constant 0 : index
    %7 = vector.load %arg4[%c0_6, %c0_7] : memref<1x128xf32, #tpu.memory_space<vmem>>, vector<1x128xf32>
    %cst_8 = arith.constant dense<0.000000e+00> : vector<128xf32>
    %8 = vector.multi_reduction <add>, %5, %cst_8 [0] : vector<128x128xf32> to vector<128xf32>
    %9 = vector.shape_cast %8 : vector<128xf32> to vector<1x128xf32>
    %10 = arith.addf %7, %9 : vector<1x128xf32>
    %c0_9 = arith.constant 0 : index
    %c0_10 = arith.constant 0 : index
    %11 = vector.load %arg4[%c0_9, %c0_10] : memref<1x128xf32, #tpu.memory_space<vmem>>, vector<1x128xf32>
    tpu.vector_store %arg4[%c0_9, %c0_10], %10 {strides = array<i32>} : memref<1x128xf32, #tpu.memory_space<vmem>>, vector<1x128xf32>,
    %c0_11 = arith.constant 0 : index
    %c0_12 = arith.constant 0 : index
    %12 = vector.load %arg5[%c0_11, %c0_12] : memref<1x128xf32, #tpu.memory_space<vmem>>, vector<1x128xf32>
    %13 = arith.mulf %5, %5 : vector<128x128xf32>
    %cst_13 = arith.constant dense<0.000000e+00> : vector<128xf32>
    %14 = vector.multi_reduction <add>, %13, %cst_13 [0] : vector<128x128xf32> to vector<128xf32>
    %15 = vector.shape_cast %14 : vector<128xf32> to vector<1x128xf32>
    %16 = arith.addf %12, %15 : vector<1x128xf32>
    %c0_14 = arith.constant 0 : index
    %c0_15 = arith.constant 0 : index
    %17 = vector.load %arg5[%c0_14, %c0_15] : memref<1x128xf32, #tpu.memory_space<vmem>>, vector<1x128xf32>
    tpu.vector_store %arg5[%c0_14, %c0_15], %16 {strides = array<i32>} : memref<1x128xf32, #tpu.memory_space<vmem>>, vector<1x128xf32>,
    return
  }
  func.func @transform_0(%arg0: i32) -> (i32, i32) {
    %c0_i32 = arith.constant 0 : i32
    %c0_i32_0 = arith.constant 0 : i32
    return %arg0, %c0_i32 : i32, i32
  }
  func.func @transform_1(%arg0: i32) -> (i32, i32) {
    %c0_i32 = arith.constant 0 : i32
    %c0_i32_0 = arith.constant 0 : i32
    %c0_i32_1 = arith.constant 0 : i32
    return %c0_i32, %c0_i32_0 : i32, i32
  }
  func.func @transform_2(%arg0: i32) -> (i32, i32) {
    %c0_i32 = arith.constant 0 : i32
    %c0_i32_0 = arith.constant 0 : i32
    return %arg0, %c0_i32 : i32, i32
  }
  func.func @transform_3(%arg0: i32) -> (i32, i32) {
    %c0_i32 = arith.constant 0 : i32
    %c0_i32_0 = arith.constant 0 : i32
    %c0_i32_1 = arith.constant 0 : i32
    return %c0_i32, %c0_i32_0 : i32, i32
  }
  func.func @transform_4(%arg0: i32) -> (i32, i32) {
    %c0_i32 = arith.constant 0 : i32
    %c0_i32_0 = arith.constant 0 : i32
    %c0_i32_1 = arith.constant 0 : i32
    return %c0_i32, %c0_i32_0 : i32, i32
  }
}

</mosaic_0001>

<llo_original>
// kernel: tpu_custom_call.1
$region0: #{tpu_custom_call.1}
  #allocation0 [shape = 'u32[]', space=smem, size = 0x4, offset = 0x4, fixed_abs, tag = 'smem constant byte address 0x4 - core index']
  #allocation1 [shape = 'u32[144,128]{1,0:T(1,128)}', space=vmem, size = 0x12000, scoped, tag = 'internal scratch']
  %s0 = inlined_call_operand.hbm [shape: bf16[512,128], index: 0, kind: input, shape index: {}]
  %s1 = inlined_call_operand.hbm [shape: bf16[128,128], index: 1, kind: input, shape index: {}]
  %s2 = inlined_call_operand.hbm [shape: f32[512,128], index: 2, kind: output, shape index: {0}]
  %s3 = inlined_call_operand.hbm [shape: f32[1,128], index: 3, kind: output, shape index: {1}]
  %s4 = inlined_call_operand.hbm [shape: f32[1,128], index: 4, kind: output, shape index: {2}]
  %5 = xla_tuple %s2, %s3, %s4
  %s6 = sld [smem:[#allocation0]]
  $region69: #{tpu_custom_call.1} parent=0
    _
  %s8 = ssub.s32 1, %s6
  %s9 = scalar_select 0, %s8, %s6
  $region1: #{tpu_custom_call.1} parent=0
    #allocation2 [shape = 'u8[65536]{0}', space=vmem, size = 0x10000, scoped, tag = 'input window, operand 0']
    #allocation3 [shape = 's32[2]{0}', space=sflag, size = 0x8, scoped, tag = 'scoped memory for tpu_custom_call.1']
    #allocation4 [shape = 's32[2]{0}', space=sflag, size = 0x8, scoped, tag = 'scoped memory for tpu_custom_call.1']
    #allocation5 [shape = 'u8[32768]{0}', space=vmem, size = 0x8000, scoped, tag = 'input window, operand 1, single buffered']
    #allocation6 [shape = 's32[1]{0}', space=sflag, size = 0x4, scoped, tag = 'scoped memory for tpu_custom_call.1']
    #allocation7 [shape = 'u8[131072]{0}', space=vmem, size = 0x20000, scoped, tag = 'output window, operand 0']
    #allocation8 [shape = 'u8[512]{0}', space=vmem, size = 0x400, scoped, tag = 'output window, operand 1, single buffered']
    #allocation9 [shape = 's32[1]{0}', space=sflag, size = 0x4, scoped, tag = 'scoped memory for tpu_custom_call.1']
    #allocation10 [shape = 'u8[512]{0}', space=vmem, size = 0x400, scoped, tag = 'output window, operand 2, single buffered']
    %10 = vsyncpa [#allocation3], 0
    %s11 = scalar_lea.sflag [#allocation3], 1
    %12 = vsyncpa %s11, 0
    %13 = vsyncpa [#allocation6], 0
    %14 = vsyncpa [#allocation4], 0
    %s15 = scalar_lea.sflag [#allocation4], 1
    %16 = vsyncpa %s15, 0
    %17 = vsyncpa [#allocation9], 0
    loop: start=0, step=1, limit=6
    $region2: #{tpu_custom_call.1} parent=1 // loop_pre_header
      _
    $region3: #{tpu_custom_call.1} parent=1 // loop_header
      %s19 = sphi 0, %s23
      %p20 = scmp.ge.s32.totalorder %s19, 6
      %s29 = sphi 0, %s31
      %s32 = sphi 0, %s29
      %s33 = sphi 0, %s32
      %s49 = sphi 0, %s33
      %s53 = sphi 0, %s53
      %s55 = sphi 0, %s53
      %s56 = sphi 0, %s55
      %s70 = sphi 0, %s56
      %s76 = sphi 0, %s78
      %s79 = sphi 0, %s76
      %s80 = sphi 0, %s79
      %s96 = sphi 0, %s80
      %s100 = sphi 0, %s100
      %s102 = sphi 0, %s100
      %s103 = sphi 0, %s102
      %s117 = sphi 0, %s103
      %s121 = sphi 0, %s121
      %s123 = sphi 0, %s121
      %s124 = sphi 0, %s123
      %s138 = sphi 0, %s124
    $region4: #{tpu_custom_call.1} parent=1 // loop_header_branch
      %22 = sbr.rel (%p20) target = $region8
    $region5: #{tpu_custom_call.1} parent=1 // loop_body
      %s24 = ssub.s32 %s19, 1
      %s25 = ssub.s32 %s19, 2
      %s26 = sadd.s32 %s19, 1
      %s27 = ssub.s32 %s19, %s26
      %p28 = scmp.eq.s32.totalorder %s27, 0
      %s30 = sadd.s32 %s29, 1
      %s31 = scalar_select %p28, %s29, %s30
      %p34 = pneg %p28
      %p35 = scmp.eq.s32.totalorder %s19, 3
      %p36 = por %p34, %p35
      %p37 = scmp.ne.s32.totalorder %s29, %s32
      %p38 = scmp.eq.s32.totalorder %s19, 0
      %p39 = por %p37, %p38
      %p40 = scmp.ne.s32.totalorder %s29, %s32
      %p41 = scmp.eq.s32.totalorder %s24, 3
      %p42 = por %p40, %p41
      %p43 = scmp.ne.s32.totalorder %s32, %s33
      %p44 = scmp.eq.s32.totalorder %s24, 0
      %p45 = por %p43, %p44
      %p46 = scmp.ne.s32.totalorder %s32, %s33
      %p47 = scmp.eq.s32.totalorder %s25, 3
      %p48 = por %p46, %p47
      %p50 = scmp.ne.s32.totalorder %s33, %s49
      %p51 = scmp.eq.s32.totalorder %s25, 0
      %p52 = por %p50, %p51
      %s54 = sadd.s32 %s53, 1
      %p57 = scmp.eq.s32.totalorder %s19, 3
      %p58 = scmp.ne.s32.totalorder %s53, %s55
      %p59 = scmp.eq.s32.totalorder %s19, 0
      %p60 = por %p58, %p59
      %p61 = scmp.ne.s32.totalorder %s53, %s55
      %p62 = scmp.eq.s32.totalorder %s24, 3
      %p63 = por %p61, %p62
      %p64 = scmp.ne.s32.totalorder %s55, %s56
      %p65 = scmp.eq.s32.totalorder %s24, 0
      %p66 = por %p64, %p65
      %p67 = scmp.ne.s32.totalorder %s55, %s56
      %p68 = scmp.eq.s32.totalorder %s25, 3
      %p69 = por %p67, %p68
      %p71 = scmp.ne.s32.totalorder %s56, %s70
      %p72 = scmp.eq.s32.totalorder %s25, 0
      %p73 = por %p71, %p72
      %s74 = ssub.s32 %s19, %s26
      %p75 = scmp.eq.s32.totalorder %s74, 0
      %s77 = sadd.s32 %s76, 1
      %s78 = scalar_select %p75, %s76, %s77
      %p81 = pneg %p75
      %p82 = scmp.eq.s32.totalorder %s19, 3
      %p83 = por %p81, %p82
      %p84 = scmp.ne.s32.totalorder %s76, %s79
      %p85 = scmp.eq.s32.totalorder %s19, 0
      %p86 = por %p84, %p85
      %p87 = scmp.ne.s32.totalorder %s76, %s79
      %p88 = scmp.eq.s32.totalorder %s24, 3
      %p89 = por %p87, %p88
      %p90 = scmp.ne.s32.totalorder %s79, %s80
      %p91 = scmp.eq.s32.totalorder %s24, 0
      %p92 = por %p90, %p91
      %p93 = scmp.ne.s32.totalorder %s79, %s80
      %p94 = scmp.eq.s32.totalorder %s25, 3
      %p95 = por %p93, %p94
      %p97 = scmp.ne.s32.totalorder %s80, %s96
      %p98 = scmp.eq.s32.totalorder %s25, 0
      %p99 = por %p97, %p98
      %s101 = sadd.s32 %s100, 1
      %p104 = scmp.eq.s32.totalorder %s19, 3
      %p105 = scmp.ne.s32.totalorder %s100, %s102
      %p106 = scmp.eq.s32.totalorder %s19, 0
      %p107 = por %p105, %p106
      %p108 = scmp.ne.s32.totalorder %s100, %s102
      %p109 = scmp.eq.s32.totalorder %s24, 3
      %p110 = por %p108, %p109
      %p111 = scmp.ne.s32.totalorder %s102, %s103
      %p112 = scmp.eq.s32.totalorder %s24, 0
      %p113 = por %p111, %p112
      %p114 = scmp.ne.s32.totalorder %s102, %s103
      %p115 = scmp.eq.s32.totalorder %s25, 3
      %p116 = por %p114, %p115
      %p118 = scmp.ne.s32.totalorder %s103, %s117
      %p119 = scmp.eq.s32.totalorder %s25, 0
      %p120 = por %p118, %p119
      %s122 = sadd.s32 %s121, 1
      %p125 = scmp.eq.s32.totalorder %s19, 3
      %p126 = scmp.ne.s32.totalorder %s121, %s123
      %p127 = scmp.eq.s32.totalorder %s19, 0
      %p128 = por %p126, %p127
      %p129 = scmp.ne.s32.totalorder %s121, %s123
      %p130 = scmp.eq.s32.totalorder %s24, 3
      %p131 = por %p129, %p130
      %p132 = scmp.ne.s32.totalorder %s123, %s124
      %p133 = scmp.eq.s32.totalorder %s24, 0
      %p134 = por %p132, %p133
      %p135 = scmp.ne.s32.totalorder %s123, %s124
      %p136 = scmp.eq.s32.totalorder %s25, 3
      %p137 = por %p135, %p136
      %p139 = scmp.ne.s32.totalorder %s124, %s138
      %p140 = scmp.eq.s32.totalorder %s25, 0
      %p141 = por %p139, %p140
      %p142 = scmp.le.s32.totalorder 1, %s19
      %p143 = scmp.lt.s32.totalorder %s19, 5
      %p144 = pnand %p142, %p143
      %p145 = pneg %p144
      // Predicated region
      $region9: #{tpu_custom_call.1} parent=5 // pred_check
        _
      $region10: #{tpu_custom_call.1} parent=5 // pred_check_branch
        %147 = sbr.rel (%p144) target = $region12
      $region11: #{tpu_custom_call.1} parent=5 // pred_region
        %s148 = ssub.s32 %s19, 1
        // Predicated region
        $region13: #{tpu_custom_call.1} parent=11 // pred_check
          %p149 = pneg %p66
        $region14: #{tpu_custom_call.1} parent=11 // pred_check_branch
          %151 = sbr.rel (%p149) target = $region16
        $region15: #{tpu_custom_call.1} parent=11 // pred_region
          %s153 = ssub.s32 1024, 1024
          %154 = vsyncadd [#allocation6], %s153
          %s155 = sshll.u32 [#allocation5], 4
          %s156 = int_to_ptr.vmem [resolvable:$true] %s155
          %161 = dma.hbm_to_vmem [thread:$0]  %s1, 1024, %s156, [#allocation6], 64, 64, 4
        $region16: #{tpu_custom_call.1} parent=11 // pred_fallthru
          _
      $region12: #{tpu_custom_call.1} parent=5 // pred_fallthru
        _
      %p162 = scmp.lt.s32.totalorder %s19, 4
      // Predicated region
      $region17: #{tpu_custom_call.1} parent=5 // pred_check
        %p163 = pneg %p162
      $region18: #{tpu_custom_call.1} parent=5 // pred_check_branch
        %165 = sbr.rel (%p163) target = $region20
      $region19: #{tpu_custom_call.1} parent=5 // pred_region
        // Predicated region
        $region21: #{tpu_custom_call.1} parent=19 // pred_check
          %p166 = pneg %p39
        $region22: #{tpu_custom_call.1} parent=19 // pred_check_branch
          %168 = sbr.rel (%p166) target = $region24
        $region23: #{tpu_custom_call.1} parent=19 // pred_region
          %s169 = sand.u32 %s29, 1
          %s170 = scalar_lea.sflag [#allocation3], %s169
          %s171 = sand.u32 %s29, 1
          %s172 = smul.addr %s171, 64
          %s173 = scalar_lea.vmem [#allocation2], %s172
          %s174 = smul.u32 16, %s19
          %s176 = ssub.s32 1024, 1024
          %177 = vsyncadd %s170, %s176
          %s178 = smul.addr %s174, 64
          %s179 = scalar_lea.hbm %s0, %s178
          %s180 = sshll.u32 %s173, 4
          %s181 = int_to_ptr.vmem [resolvable:$true] %s180
          %186 = dma.hbm_to_vmem [thread:$0]  %s179, 1024, %s181, %s170, 64, 64, 4
        $region24: #{tpu_custom_call.1} parent=19 // pred_fallthru
          _
      $region20: #{tpu_custom_call.1} parent=5 // pred_fallthru
        _
      %p187 = scmp.le.s32.totalorder 1, %s19
      %p188 = scmp.lt.s32.totalorder %s19, 5
      %p189 = pnand %p187, %p188
      %p190 = pneg %p189
      // Predicated region
      $region25: #{tpu_custom_call.1} parent=5 // pred_check
        _
      $region26: #{tpu_custom_call.1} parent=5 // pred_check_branch
        %192 = sbr.rel (%p189) target = $region28
      $region27: #{tpu_custom_call.1} parent=5 // pred_region
        %s193 = ssub.s32 %s19, 1
        %s194 = sand.u32 %s32, 1
        %s195 = scalar_lea.sflag [#allocation3], %s194
        %s196 = sand.u32 %s32, 1
        %s197 = smul.addr %s196, 64
        %s198 = scalar_lea.vmem [#allocation2], %s197
        // Predicated region
        $region29: #{tpu_custom_call.1} parent=27 // pred_check
          %p199 = pneg %p45
        $region30: #{tpu_custom_call.1} parent=27 // pred_check_branch
          %201 = sbr.rel (%p199) target = $region32
        $region31: #{tpu_custom_call.1} parent=27 // pred_region
          %202 = dma.done %s195, 1024
        $region32: #{tpu_custom_call.1} parent=27 // pred_fallthru
          _
        // Predicated region
        $region33: #{tpu_custom_call.1} parent=27 // pred_check
          %p203 = pneg %p66
        $region34: #{tpu_custom_call.1} parent=27 // pred_check_branch
          %205 = sbr.rel (%p203) target = $region36
        $region35: #{tpu_custom_call.1} parent=27 // pred_region
          %206 = dma.done [#allocation6], 1024
        $region36: #{tpu_custom_call.1} parent=27 // pred_fallthru
          _
        %s207 = sand.u32 %s32, 1
        %s208 = scalar_lea.sflag [#allocation3], %s207
        %s209 = sand.u32 %s32, 1
        %s210 = smul.addr %s209, 64
        %s211 = scalar_lea.vmem [#allocation2], %s210
        %p212 = pneg %p45
        %p213 = pneg %p42
        %p214 = pneg %p66
        %p215 = pneg %p63
        %p216 = pneg %p92
        %p217 = pneg %p89
        %s218 = sand.u32 %s79, 1
        %s219 = scalar_lea.sflag [#allocation4], %s218
        %s220 = sand.u32 %s79, 1
        %s221 = smul.addr %s220, 128
        %s222 = scalar_lea.vmem [#allocation7], %s221
        %p223 = pneg %p113
        %p224 = pneg %p110
        %p225 = pneg %p134
        %p226 = pneg %p131
        %s227 = smul.u32 16, %s24
        %s228 = smul.u32 16, %s24
        %p230 = scmp.eq.s32.totalorder %s24, 0
        // Predicated region
        $region37: #{tpu_custom_call.1} parent=27 // pred_check
          %p231 = pneg %p230
        $region38: #{tpu_custom_call.1} parent=27 // pred_check_branch
          %233 = sbr.rel (%p231) target = $region40
        $region39: #{tpu_custom_call.1} parent=27 // pred_region
          %234 = vst [vmem:[#allocation8] sm:$0x1] 0.0
          %235 = vst [vmem:[#allocation10] sm:$0x1] 0.0
        $region40: #{tpu_custom_call.1} parent=27 // pred_fallthru
          _
        %v236 = vld [vmem:[%s198] sm:$0xf]
        %v237 = vld [vmem:[%s198 + $0x4] sm:$0xf]
        %v238 = vld [vmem:[%s198 + $0x8] sm:$0xf]
        %v239 = vld [vmem:[%s198 + $0xc] sm:$0xf]
        %v240 = vld [vmem:[%s198 + $0x10] sm:$0xf]
        %v241 = vld [vmem:[%s198 + $0x14] sm:$0xf]
        %v242 = vld [vmem:[%s198 + $0x18] sm:$0xf]
        %v243 = vld [vmem:[%s198 + $0x1c] sm:$0xf]
        %v244 = vld [vmem:[%s198 + $0x20] sm:$0xf]
        %v245 = vld [vmem:[%s198 + $0x24] sm:$0xf]
        %v246 = vld [vmem:[%s198 + $0x28] sm:$0xf]
        %v247 = vld [vmem:[%s198 + $0x2c] sm:$0xf]
        %v248 = vld [vmem:[%s198 + $0x30] sm:$0xf]
        %v249 = vld [vmem:[%s198 + $0x34] sm:$0xf]
        %v250 = vld [vmem:[%s198 + $0x38] sm:$0xf]
        %v251 = vld [vmem:[%s198 + $0x3c] sm:$0xf]
        %v252 = vld [vmem:[#allocation5] sm:$0xf]
        %v253 = vld [vmem:[#allocation5 + $0x4] sm:$0xf]
        %v254 = vld [vmem:[#allocation5 + $0x8] sm:$0xf]
        %v255 = vld [vmem:[#allocation5 + $0xc] sm:$0xf]
        %v256 = vld [vmem:[#allocation5 + $0x10] sm:$0xf]
        %v257 = vld [vmem:[#allocation5 + $0x14] sm:$0xf]
        %v258 = vld [vmem:[#allocation5 + $0x18] sm:$0xf]
        %v259 = vld [vmem:[#allocation5 + $0x1c] sm:$0xf]
        %v260 = vld [vmem:[#allocation5 + $0x20] sm:$0xf]
        %v261 = vld [vmem:[#allocation5 + $0x24] sm:$0xf]
        %v262 = vld [vmem:[#allocation5 + $0x28] sm:$0xf]
        %v263 = vld [vmem:[#allocation5 + $0x2c] sm:$0xf]
        %v264 = vld [vmem:[#allocation5 + $0x30] sm:$0xf]
        %v265 = vld [vmem:[#allocation5 + $0x34] sm:$0xf]
        %v266 = vld [vmem:[#allocation5 + $0x38] sm:$0xf]
        %v267 = vld [vmem:[#allocation5 + $0x3c] sm:$0xf]
        %v284 = vunpack.c.l.b16 %v236
        %v285 = vunpack.c.l.b16 %v237
        %v286 = vunpack.c.l.b16 %v238
        %v287 = vunpack.c.l.b16 %v239
        %v288 = vunpack.c.l.b16 %v240
        %v289 = vunpack.c.l.b16 %v241
        %v290 = vunpack.c.l.b16 %v242
        %v291 = vunpack.c.l.b16 %v243
        %v292 = vunpack.c.l.b16 %v244
        %v293 = vunpack.c.l.b16 %v245
        %v294 = vunpack.c.l.b16 %v246
        %v295 = vunpack.c.l.b16 %v247
        %v296 = vunpack.c.l.b16 %v248
        %v297 = vunpack.c.l.b16 %v249
        %v298 = vunpack.c.l.b16 %v250
        %v299 = vunpack.c.l.b16 %v251
        %v300 = vpack.c.b16 %v285, %v284
        %v301 = vpack.c.b16 %v287, %v286
        %v302 = vpack.c.b16 %v289, %v288
        %v303 = vpack.c.b16 %v291, %v290
        %v304 = vpack.c.b16 %v293, %v292
        %v305 = vpack.c.b16 %v295, %v294
        %v306 = vpack.c.b16 %v297, %v296
        %v307 = vpack.c.b16 %v299, %v298
        %v332 = vunpack.c.l.b16 %v252
        %v333 = vunpack.c.l.b16 %v253
        %v334 = vunpack.c.l.b16 %v254
        %v335 = vunpack.c.l.b16 %v255
        %v336 = vunpack.c.l.b16 %v256
        %v337 = vunpack.c.l.b16 %v257
        %v338 = vunpack.c.l.b16 %v258
        %v339 = vunpack.c.l.b16 %v259
        %v340 = vunpack.c.l.b16 %v260
        %v341 = vunpack.c.l.b16 %v261
        %v342 = vunpack.c.l.b16 %v262
        %v343 = vunpack.c.l.b16 %v263
        %v344 = vunpack.c.l.b16 %v264
        %v345 = vunpack.c.l.b16 %v265
        %v346 = vunpack.c.l.b16 %v266
        %v347 = vunpack.c.l.b16 %v267
        %v348 = vpack.c.b16 %v333, %v332
        %v349 = vpack.c.b16 %v335, %v334
        %v350 = vpack.c.b16 %v337, %v336
        %v351 = vpack.c.b16 %v339, %v338
        %v352 = vpack.c.b16 %v341, %v340
        %v353 = vpack.c.b16 %v343, %v342
        %v354 = vpack.c.b16 %v345, %v344
        %v355 = vpack.c.b16 %v347, %v346
        %364 = vmatprep.subr.bf16.mxu0 0
        %365 = vmatpush1.bf16.msra.mxu0 %v348
        %366 = vmatprep.subr.bf16.mxu0 0
        %367 = vmatpush1.bf16.msra.mxu0 %v349
        %368 = vmatprep.subr.bf16.mxu0 0
        %369 = vmatpush1.bf16.msra.mxu0 %v350
        %370 = vmatprep.subr.bf16.mxu0 0
        %371 = vmatpush1.bf16.msra.mxu0 %v351
        %372 = vmatprep.subr.bf16.mxu0 0
        %373 = vmatpush1.bf16.msra.mxu0 %v352
        %374 = vmatprep.subr.bf16.mxu0 0
        %375 = vmatpush1.bf16.msra.mxu0 %v353
        %376 = vmatprep.subr.bf16.mxu0 0
        %377 = vmatpush1.bf16.msra.mxu0 %v354
        %378 = vmatprep.subr.bf16.mxu0 0
        %379 = vmatpush1.bf16.msra.mxu0 %v355
        %380 = vmatprep.subr.bf16.mxu0 0
        %381 = vmatpush1.bf16.msra.mxu0 0
        %382 = vmatprep.subr.bf16.mxu0 0
        %383 = vmatpush1.bf16.msra.mxu0 0
        %384 = vmatprep.subr.bf16.mxu0 0
        %385 = vmatpush1.bf16.msra.mxu0 0
        %386 = vmatprep.subr.bf16.mxu0 0
        %387 = vmatpush1.bf16.msra.mxu0 0
        %388 = vmatprep.subr.bf16.mxu0 0
        %389 = vmatpush1.bf16.msra.mxu0 0
        %390 = vmatprep.subr.bf16.mxu0 0
        %391 = vmatpush1.bf16.msra.mxu0 0
        %392 = vmatprep.subr.bf16.mxu0 0
        %393 = vmatpush1.bf16.msra.mxu0 0
        %394 = vmatprep.subr.bf16.mxu0 0
        %395 = vmatpush1.bf16.msra.mxu0 0
        %396 = vmatprep.mubr.bf16.mxu0 0
        %397 = vmatmul.mubr.bf16.gmra.mrb[0].mxu0 %v300
        %v398 = vpop.f32.mrb[0].mxu0
        %v399 = vadd.f32 0.0, %v398
        %v400 = vpop.f32.mrb[0].mxu0
        %v401 = vpop.f32.mrb[0].mxu0
        %v402 = vadd.f32 0.0, %v401
        %v403 = vpop.f32.mrb[0].mxu0
        %404 = vmatprep.mubr.bf16.mxu0 0
        %405 = vmatmul.mubr.bf16.gmra.mrb[0].mxu0 %v301
        %v406 = vpop.f32.mrb[0].mxu0
        %v407 = vadd.f32 0.0, %v406
        %v408 = vpop.f32.mrb[0].mxu0
        %v409 = vpop.f32.mrb[0].mxu0
        %v410 = vadd.f32 0.0, %v409
        %v411 = vpop.f32.mrb[0].mxu0
        %412 = vmatprep.mubr.bf16.mxu0 0
        %413 = vmatmul.mubr.bf16.gmra.mrb[0].mxu0 %v302
        %v414 = vpop.f32.mrb[0].mxu0
        %v415 = vadd.f32 0.0, %v414
        %v416 = vpop.f32.mrb[0].mxu0
        %v417 = vpop.f32.mrb[0].mxu0
        %v418 = vadd.f32 0.0, %v417
        %v419 = vpop.f32.mrb[0].mxu0
        %420 = vmatprep.mubr.bf16.mxu0 0
        %421 = vmatmul.mubr.bf16.gmra.mrb[0].mxu0 %v303
        %v422 = vpop.f32.mrb[0].mxu0
        %v423 = vadd.f32 0.0, %v422
        %v424 = vpop.f32.mrb[0].mxu0
        %v425 = vpop.f32.mrb[0].mxu0
        %v426 = vadd.f32 0.0, %v425
        %v427 = vpop.f32.mrb[0].mxu0
        %428 = vmatprep.mubr.bf16.mxu0 0
        %429 = vmatmul.mubr.bf16.gmra.mrb[0].mxu0 %v304
        %v430 = vpop.f32.mrb[0].mxu0
        %v431 = vadd.f32 0.0, %v430
        %v432 = vpop.f32.mrb[0].mxu0
        %v433 = vpop.f32.mrb[0].mxu0
        %v434 = vadd.f32 0.0, %v433
        %v435 = vpop.f32.mrb[0].mxu0
        %436 = vmatprep.mubr.bf16.mxu0 0
        %437 = vmatmul.mubr.bf16.gmra.mrb[0].mxu0 %v305
        %v438 = vpop.f32.mrb[0].mxu0
        %v439 = vadd.f32 0.0, %v438
        %v440 = vpop.f32.mrb[0].mxu0
        %v441 = vpop.f32.mrb[0].mxu0
        %v442 = vadd.f32 0.0, %v441
        %v443 = vpop.f32.mrb[0].mxu0
        %444 = vmatprep.mubr.bf16.mxu0 0
        %445 = vmatmul.mubr.bf16.gmra.mrb[0].mxu0 %v306
        %v446 = vpop.f32.mrb[0].mxu0
        %v447 = vadd.f32 0.0, %v446
        %v448 = vpop.f32.mrb[0].mxu0
        %v449 = vpop.f32.mrb[0].mxu0
        %v450 = vadd.f32 0.0, %v449
        %v451 = vpop.f32.mrb[0].mxu0
        %452 = vmatprep.mubr.bf16.mxu0 0
        %453 = vmatmul.mubr.bf16.gmra.mrb[0].mxu0 %v307
        %v454 = vpop.f32.mrb[0].mxu0
        %v455 = vadd.f32 0.0, %v454
        %v456 = vpop.f32.mrb[0].mxu0
        %v457 = vpop.f32.mrb[0].mxu0
        %v458 = vadd.f32 0.0, %v457
        %v459 = vpop.f32.mrb[0].mxu0
        %460 = vdwg.mxu0
        %461 = vst [vmem:[%s222] sm:$0xff] %v399
        %462 = vst [vmem:[%s222 + $0x8] sm:$0xff] %v402
        %463 = vst [vmem:[%s222 + $0x10] sm:$0xff] %v407
        %464 = vst [vmem:[%s222 + $0x18] sm:$0xff] %v410
        %465 = vst [vmem:[%s222 + $0x20] sm:$0xff] %v415
        %466 = vst [vmem:[%s222 + $0x28] sm:$0xff] %v418
        %467 = vst [vmem:[%s222 + $0x30] sm:$0xff] %v423
        %468 = vst [vmem:[%s222 + $0x38] sm:$0xff] %v426
        %469 = vst [vmem:[%s222 + $0x40] sm:$0xff] %v431
        %470 = vst [vmem:[%s222 + $0x48] sm:$0xff] %v434
        %471 = vst [vmem:[%s222 + $0x50] sm:$0xff] %v439
        %472 = vst [vmem:[%s222 + $0x58] sm:$0xff] %v442
        %473 = vst [vmem:[%s222 + $0x60] sm:$0xff] %v447
        %474 = vst [vmem:[%s222 + $0x68] sm:$0xff] %v450
        %475 = vst [vmem:[%s222 + $0x70] sm:$0xff] %v455
        %476 = vst [vmem:[%s222 + $0x78] sm:$0xff] %v458
        %v477 = vld [vmem:[#allocation8] sm:$0x1]
        %v478 = vadd.f32 %v399, %v402
        %v479 = vadd.f32 %v478, %v407
        %v480 = vadd.f32 %v479, %v410
        %v481 = vadd.f32 %v480, %v415
        %v482 = vadd.f32 %v481, %v418
        %v483 = vadd.f32 %v482, %v423
        %v484 = vadd.f32 %v483, %v426
        %v485 = vadd.f32 %v484, %v431
        %v486 = vadd.f32 %v485, %v434
        %v487 = vadd.f32 %v486, %v439
        %v488 = vadd.f32 %v487, %v442
        %v489 = vadd.f32 %v488, %v447
        %v490 = vadd.f32 %v489, %v450
        %v491 = vadd.f32 %v490, %v455
        %v492 = vadd.f32 %v491, %v458
        %v493 = vrot.slane %v492, 4
        %v494 = vadd.f32 %v492, %v493
        %v495 = vrot.slane %v494, 2
        %v496 = vadd.f32 %v494, %v495
        %v497 = vrot.slane %v496, 1
        %v498 = vadd.f32 %v496, %v497
        %v499 = vadd.f32 %v477, %v498
        %500 = vst [vmem:[#allocation8] sm:$0x1] %v499
        %v501 = vld [vmem:[#allocation10] sm:$0x1]
        %v502 = vmul.f32 %v399, %v399
        %v503 = vmul.f32 %v402, %v402
        %v504 = vmul.f32 %v407, %v407
        %v505 = vmul.f32 %v410, %v410
        %v506 = vmul.f32 %v415, %v415
        %v507 = vmul.f32 %v418, %v418
        %v508 = vmul.f32 %v423, %v423
        %v509 = vmul.f32 %v426, %v426
        %v510 = vmul.f32 %v431, %v431
        %v511 = vmul.f32 %v434, %v434
        %v512 = vmul.f32 %v439, %v439
        %v513 = vmul.f32 %v442, %v442
        %v514 = vmul.f32 %v447, %v447
        %v515 = vmul.f32 %v450, %v450
        %v516 = vmul.f32 %v455, %v455
        %v517 = vmul.f32 %v458, %v458
        %v518 = vadd.f32 %v502, %v503
        %v519 = vadd.f32 %v518, %v504
        %v520 = vadd.f32 %v519, %v505
        %v521 = vadd.f32 %v520, %v506
        %v522 = vadd.f32 %v521, %v507
        %v523 = vadd.f32 %v522, %v508
        %v524 = vadd.f32 %v523, %v509
        %v525 = vadd.f32 %v524, %v510
        %v526 = vadd.f32 %v525, %v511
        %v527 = vadd.f32 %v526, %v512
        %v528 = vadd.f32 %v527, %v513
        %v529 = vadd.f32 %v528, %v514
        %v530 = vadd.f32 %v529, %v515
        %v531 = vadd.f32 %v530, %v516
        %v532 = vadd.f32 %v531, %v517
        %v533 = vrot.slane %v532, 4
        %v534 = vadd.f32 %v532, %v533
        %v535 = vrot.slane %v534, 2
        %v536 = vadd.f32 %v534, %v535
        %v537 = vrot.slane %v536, 1
        %v538 = vadd.f32 %v536, %v537
        %v539 = vadd.f32 %v501, %v538
        %540 = vst [vmem:[#allocation10] sm:$0x1] %v539
        %s541 = sand.u32 %s79, 1
        %s542 = scalar_lea.sflag [#allocation4], %s541
        %s543 = sand.u32 %s79, 1
        %s544 = smul.addr %s543, 128
        %s545 = scalar_lea.vmem [#allocation7], %s544
        // Predicated region
        $region41: #{tpu_custom_call.1} parent=27 // pred_check
          %p546 = pneg %p89
        $region42: #{tpu_custom_call.1} parent=27 // pred_check_branch
          %548 = sbr.rel (%p546) target = $region44
        $region43: #{tpu_custom_call.1} parent=27 // pred_region
          %s549 = smul.u32 16, %s24
          %s551 = ssub.s32 2048, 2048
          %552 = vsyncadd %s542, %s551
          %s553 = smul.addr %s549, 128
          %s554 = scalar_lea.hbm %s2, %s553
          %s555 = sshll.u32 %s545, 4
          %s556 = int_to_ptr.vmem [resolvable:$true] %s555
          %561 = dma.vmem_to_hbm [thread:$0]  %s556, 2048, %s554, %s542, 128, 128, 8
        $region44: #{tpu_custom_call.1} parent=27 // pred_fallthru
          _
        // Predicated region
        $region45: #{tpu_custom_call.1} parent=27 // pred_check
          %p562 = pneg %p110
        $region46: #{tpu_custom_call.1} parent=27 // pred_check_branch
          %564 = sbr.rel (%p562) target = $region48
        $region47: #{tpu_custom_call.1} parent=27 // pred_region
          %s566 = ssub.s32 16, 16
          %567 = vsyncadd [#allocation9], %s566
          %s569 = sshll.u32 [#allocation8], 4
          %s570 = int_to_ptr.vmem [resolvable:$true] %s569
          %572 = dma.vmem_to_hbm [thread:$0]  %s570, 16, %s3, [#allocation9]
        $region48: #{tpu_custom_call.1} parent=27 // pred_fallthru
          _
        // Predicated region
        $region49: #{tpu_custom_call.1} parent=27 // pred_check
          %p573 = pneg %p131
        $region50: #{tpu_custom_call.1} parent=27 // pred_check_branch
          %575 = sbr.rel (%p573) target = $region52
        $region51: #{tpu_custom_call.1} parent=27 // pred_region
          %s577 = ssub.s32 16, 16
          %578 = vsyncadd [#allocation9], %s577
          %s580 = sshll.u32 [#allocation10], 4
          %s581 = int_to_ptr.vmem [resolvable:$true] %s580
          %583 = dma.vmem_to_hbm [thread:$0]  %s581, 16, %s4, [#allocation9]
        $region52: #{tpu_custom_call.1} parent=27 // pred_fallthru
          _
        // Predicated region
        $region53: #{tpu_custom_call.1} parent=27 // pred_check
          %p584 = pneg %p110
        $region54: #{tpu_custom_call.1} parent=27 // pred_check_branch
          %586 = sbr.rel (%p584) target = $region56
        $region55: #{tpu_custom_call.1} parent=27 // pred_region
          %587 = dma.done [#allocation9], 16
        $region56: #{tpu_custom_call.1} parent=27 // pred_fallthru
          _
        // Predicated region
        $region57: #{tpu_custom_call.1} parent=27 // pred_check
          %p588 = pneg %p131
        $region58: #{tpu_custom_call.1} parent=27 // pred_check_branch
          %590 = sbr.rel (%p588) target = $region60
        $region59: #{tpu_custom_call.1} parent=27 // pred_region
          %591 = dma.done [#allocation9], 16
        $region60: #{tpu_custom_call.1} parent=27 // pred_fallthru
          _
      $region28: #{tpu_custom_call.1} parent=5 // pred_fallthru
        _
      %p592 = scmp.le.s32.totalorder 2, %s19
      // Predicated region
      $region61: #{tpu_custom_call.1} parent=5 // pred_check
        %p593 = pneg %p592
      $region62: #{tpu_custom_call.1} parent=5 // pred_check_branch
        %595 = sbr.rel (%p593) target = $region64
      $region63: #{tpu_custom_call.1} parent=5 // pred_region
        %s596 = ssub.s32 %s19, 2
        // Predicated region
        $region65: #{tpu_custom_call.1} parent=63 // pred_check
          %p597 = pneg %p95
        $region66: #{tpu_custom_call.1} parent=63 // pred_check_branch
          %599 = sbr.rel (%p597) target = $region68
        $region67: #{tpu_custom_call.1} parent=63 // pred_region
          %s600 = sand.u32 %s80, 1
          %s601 = scalar_lea.sflag [#allocation4], %s600
          %s602 = sand.u32 %s80, 1
          %s603 = smul.addr %s602, 128
          %s604 = scalar_lea.vmem [#allocation7], %s603
          %605 = dma.done %s601, 2048
        $region68: #{tpu_custom_call.1} parent=63 // pred_fallthru
          _
      $region64: #{tpu_custom_call.1} parent=5 // pred_fallthru
        _
    $region6: #{tpu_custom_call.1} parent=1 // loop_footer
      %s23 = sadd.s32 1, %s19
    $region7: #{tpu_custom_call.1} parent=1 // loop_footer_branch
      %18 = sbr.rel target = $region3
    $region8: #{tpu_custom_call.1} parent=1 // loop_exit
      _
    %606 = vsyncpa [#allocation3], 1
    %s607 = scalar_lea.sflag [#allocation3], 1
    %608 = vsyncpa %s607, 1
    %609 = vsyncpa [#allocation6], 1
    %610 = vsyncpa [#allocation4], 1
    %s611 = scalar_lea.sflag [#allocation4], 1
    %612 = vsyncpa %s611, 1
    %613 = vsyncpa [#allocation9], 1

</llo_original>
